<compile_context>
chip_gen: v7x
topology: tpu7x:2x2x1
jax: 0.10.0
libtpu: 0.0.40
codegen_flags: <defaults>
</compile_context>

<pallas_src>
import functools
import math

import jax
import jax.numpy as jnp
from jax.experimental import pallas as pl
from jax.experimental.pallas import tpu as pltpu


def _round_up(x, m):
    return (x + m - 1) // m * m


def _pick_tile_h(H, P, max_rows=4096):
    """Largest divisor of H with TH*P <= max_rows; prefer >=2 row tiles so both v7x TCs get work."""
    divs = [d for d in range(1, H + 1) if H % d == 0]
    cands = [d for d in divs if d * P <= max_rows] or divs[:1]
    th = cands[-1]
    if th == H and len(cands) > 1 and cands[-2] * P >= 64:
        th = cands[-2]
    return th


def _conv3x3_kernel(xm_ref, xh0_ref, xh1_ref, w_ref, b_ref, o_ref, *, taps, apply_relu):
    # xm_ref : (1, TH*P, Cin)   main row tile of the flattened padded image (bf16)
    # xh*_ref: (1, P,    Cin)   the next two padded image rows (halo)        (bf16)
    # w_ref  : (9*Cin, Cout_k)  folded 3x3 weights, (kh, kw, cin)-major      (bf16)
    # b_ref  : (1, Cout_k)      bias, zero-padded                            (f32)
    # o_ref  : (1, TH*P, Cout_k)                                             (bf16 or f32)
    m = xm_ref.shape[1]
    cin = xm_ref.shape[2]
    tail = jnp.zeros((16, cin), dtype=xm_ref.dtype)   # covers dy=2, dx>0 spill (pad cols only)
    x_win = jnp.concatenate(
        [xm_ref[0], xh0_ref[0], xh1_ref[0], tail], axis=0)               # (TH*P + 2P + 16, Cin)
    # Fold the 9 taps into the contraction dim: one (TH*P, 9*Cin) @ (9*Cin, Cout_k) matmul
    # instead of 9 K=Cin dots -> far better MXU fill, single f32 accumulation on the MXU.
    patches = jnp.concatenate([x_win[off:off + m, :] for off in taps], axis=-1)
    acc = jnp.dot(patches, w_ref[...], preferred_element_type=jnp.float32)
    acc = acc + b_ref[...]
    if apply_relu:
        acc = jnp.maximum(acc, 0.0)
    o_ref[0] = acc.astype(o_ref.dtype)


def conv3x3_same_nhwc(x_nhwc, w_oihw, bias, apply_relu=False, out_dtype=jnp.float32):
    """3x3 'same' conv (PyTorch Conv2d(k=3, padding=1) semantics) on an NHWC tensor via Pallas."""
    N, H, W, Cin = x_nhwc.shape
    Cout = w_oihw.shape[0]
    P = _round_up(W + 2, 16)          # padded width: 1 left zero col, >=1 right zero cols (bf16 tile friendly)
    R = H + 2                         # padded height: 1 top zero row, 1 bottom zero row
    Cout_k = _round_up(Cout, 128)     # lane-dense output channels (zero-padded weight columns)
    TH = _pick_tile_h(H, P)
    T = H // TH
    m = TH * P

    # --- wrapper glue: pad once (no 9x shifted-copy materialization), flatten rows*cols ---
    x_pad = jnp.pad(x_nhwc.astype(jnp.bfloat16),
                    ((0, 0), (1, 1), (1, P - W - 1), (0, 0)))            # (N, H+2, P, Cin)
    x_flat = x_pad.reshape(N, R * P, Cin)                                # (N, (H+2)*P, Cin)

    # Folded weights: rows ordered (kh, kw, cin); zero-pad output channels to Cout_k.
    w_mat = jnp.transpose(w_oihw, (2, 3, 1, 0)).reshape(9 * Cin, Cout)
    w_mat = jnp.pad(w_mat, ((0, 0), (0, Cout_k - Cout))).astype(jnp.bfloat16)
    b_row = jnp.pad(bias.reshape(1, Cout).astype(jnp.float32), ((0, 0), (0, Cout_k - Cout)))

    taps = tuple(dy * P + dx for dy in range(3) for dx in range(3))
    kernel = functools.partial(_conv3x3_kernel, taps=taps, apply_relu=apply_relu)

    out_bytes = jnp.dtype(out_dtype).itemsize
    cost = pl.CostEstimate(
        flops=int(2 * N * H * P * 9 * Cin * Cout_k),
        transcendentals=0,
        bytes_accessed=int(x_flat.size * 2 + w_mat.size * 2 + N * H * P * Cout_k * out_bytes))

    out_wide = pl.pallas_call(
        kernel,
        out_shape=jax.ShapeDtypeStruct((N, H * P, Cout_k), out_dtype),
        grid_spec=pltpu.PrefetchScalarGridSpec(
            num_scalar_prefetch=0,
            grid=(N, T),
            in_specs=[
                # main row tile: TH padded image rows = TH*P flat rows
                pl.BlockSpec((1, m, Cin), lambda n, t: (n, t, 0)),
                # 2 halo rows (next padded image rows), aliasing the same x_flat array
                pl.BlockSpec((1, P, Cin), lambda n, t: (n, (t + 1) * TH + 0, 0)),
                pl.BlockSpec((1, P, Cin), lambda n, t: (n, (t + 1) * TH + 1, 0)),
                # weights/bias: same block every step -> stays resident, no re-DMA
                pl.BlockSpec((9 * Cin, Cout_k), lambda n, t: (0, 0)),
                pl.BlockSpec((1, Cout_k), lambda n, t: (0, 0)),
            ],
            out_specs=pl.BlockSpec((1, m, Cout_k), lambda n, t: (n, t, 0)),
        ),
        compiler_params=pltpu.CompilerParams(
            dimension_semantics=("parallel", "parallel"),
            vmem_limit_bytes=48 * 1024 * 1024),
        cost_estimate=cost,
    )(x_flat, x_flat, x_flat, w_mat, b_row)

    # Drop the (garbage) right-pad columns and the padded output channels.
    out = out_wide.reshape(N, H, P, Cout_k)[:, :, :W, :Cout]
    return out                                                            # (N, H, W, Cout)


def init_upsampler_params(key, scale_factor, n_features):
    """Deterministic init mirroring nn.Conv2d default (uniform +-1/sqrt(fan_in))."""
    is_pow2 = (scale_factor & (scale_factor - 1)) == 0
    if is_pow2:
        rs = [2] * int(math.log(scale_factor, 2))
    elif scale_factor == 3:
        rs = [3]
    else:
        raise NotImplementedError
    params = []
    for r in rs:
        key, k1, k2 = jax.random.split(key, 3)
        cout = r * r * n_features
        bound = 1.0 / math.sqrt(n_features * 9)
        w = jax.random.uniform(k1, (cout, n_features, 3, 3), jnp.float32, -bound, bound)
        b = jax.random.uniform(k2, (cout,), jnp.float32, -bound, bound)
        params.append((w, b, r))
    return params


def upsampler_forward(x_nchw, params, activation=None):
    """Pallas-backed forward for Upsampler: [Conv3x3 -> PixelShuffle(r) -> act] per stage."""
    act = (activation or "").lower()
    # TODO(synk): 'prelu' (learned per-channel slope) not implemented; only None / 'relu'.
    y = jnp.transpose(x_nchw, (0, 2, 3, 1))           # NHWC once; stay channels-last across stages
    n_stages = len(params)
    for s, (w, b, r) in enumerate(params):
        N, H, W, C = y.shape
        # Intermediate stages store bf16 (next stage casts to bf16 anyway); last stage stores f32.
        out_dtype = jnp.float32 if s == n_stages - 1 else jnp.bfloat16
        # ReLU is applied inside the kernel (before the shuffle); since PixelShuffle is a pure
        # permutation this is mathematically identical to PyTorch's Conv -> Shuffle -> ReLU order.
        conv = conv3x3_same_nhwc(y, w, b, apply_relu=(act == "relu"),
                                 out_dtype=out_dtype)                    # (N, H, W, r*r*C)
        # PixelShuffle in NHWC: channel co = c*r*r + i*r + j -> pixel (h*r+i, w*r+j), channel c.
        y = jnp.transpose(conv.reshape(N, H, W, C, r, r),
                          (0, 1, 4, 2, 5, 3)).reshape(N, H * r, W * r, C)
    return jnp.transpose(y, (0, 3, 1, 2))             # back to NCHW at the module boundary


def _reference_forward(x_nchw, params, activation=None):
    """Pure-JAX f32 reference (lax conv) reproducing the PyTorch module exactly."""
    act = (activation or "").lower()
    y = x_nchw
    for w, b, r in params:
        N, C, H, W = y.shape
        conv = jax.lax.conv_general_dilated(
            y, w, window_strides=(1, 1), padding=((1, 1), (1, 1)),
            dimension_numbers=("NCHW", "OIHW", "NCHW"))
        conv = conv + b[None, :, None, None]
        conv = conv.reshape(N, C, r, r, H, W)
        conv = jnp.transpose(conv, (0, 1, 4, 2, 5, 3)).reshape(N, C, H * r, W * r)
        if act == "relu":
            conv = jnp.maximum(conv, 0.0)
        y = conv
    return y


if __name__ == "__main__":
    key = jax.random.PRNGKey(0)
    k_x, k_p = jax.random.split(key)

    scale_factor = 2
    n_features = 4
    activation = "relu"

    x = jax.random.normal(k_x, (2, n_features, 16, 16), dtype=jnp.float32)  # NCHW
    params = init_upsampler_params(k_p, scale_factor, n_features)

    out = jax.block_until_ready(upsampler_forward(x, params, activation=activation))
    ref = jax.block_until_ready(_reference_forward(x, params, activation=activation))

    assert out.shape == (2, n_features, 16 * scale_factor, 16 * scale_factor), out.shape
    # bf16 activations/weights with f32 accumulation -> loosened tolerance vs the f32 reference.
    assert jnp.allclose(out, ref, atol=5e-2, rtol=5e-2), float(jnp.max(jnp.abs(out - ref)))
    print("KERNEL_OK")
</pallas_src>

<mosaic_0001>
module attributes {stable_mosaic.version = 11 : i64} {
  func.func @_conv3x3_kernel(%arg0: i32, %arg1: i32, %arg2: memref<1x256x4xbf16, #tpu.memory_space<vmem>>, %arg3: memref<1x32x4xbf16, #tpu.memory_space<vmem>>, %arg4: memref<1x32x4xbf16, #tpu.memory_space<vmem>>, %arg5: memref<36x128xbf16, #tpu.memory_space<vmem>>, %arg6: memref<1x128xf32, #tpu.memory_space<vmem>>, %arg7: memref<1x256x128xf32, #tpu.memory_space<vmem>>) attributes {dimension_semantics = [#tpu.dimension_semantics<parallel>, #tpu.dimension_semantics<parallel>], iteration_bounds = array<i64: 2, 2>, scalar_prefetch = 0 : i64, scratch_operands = 0 : i64, tpu.core_type = #tpu.core_type<tc>, window_params = [{transform_indices = @transform_0, window_bounds = array<i64: 1, 256, 4>}, {transform_indices = @transform_1, window_bounds = array<i64: 1, 32, 4>}, {transform_indices = @transform_2, window_bounds = array<i64: 1, 32, 4>}, {pipeline_mode = #tpu.pipeline_mode<synchronous>, transform_indices = @transform_3, window_bounds = array<i64: 36, 128>}, {pipeline_mode = #tpu.pipeline_mode<synchronous>, transform_indices = @transform_4, window_bounds = array<i64: 1, 128>}, {transform_indices = @transform_5, window_bounds = array<i64: 1, 256, 128>}]} {
    %cst = arith.constant 0.000000e+00 : bf16
    %0 = vector.broadcast %cst : bf16 to vector<16x4xbf16>
    %c0 = arith.constant 0 : index
    %c0_0 = arith.constant 0 : index
    %c0_1 = arith.constant 0 : index
    %1 = vector.load %arg2[%c0, %c0_0, %c0_1] : memref<1x256x4xbf16, #tpu.memory_space<vmem>>, vector<1x256x4xbf16>
    %2 = vector.shape_cast %1 : vector<1x256x4xbf16> to vector<256x4xbf16>
    %c0_2 = arith.constant 0 : index
    %c0_3 = arith.constant 0 : index
    %c0_4 = arith.constant 0 : index
    %3 = vector.load %arg3[%c0_2, %c0_3, %c0_4] : memref<1x32x4xbf16, #tpu.memory_space<vmem>>, vector<1x32x4xbf16>
    %4 = vector.shape_cast %3 : vector<1x32x4xbf16> to vector<32x4xbf16>
    %c0_5 = arith.constant 0 : index
    %c0_6 = arith.constant 0 : index
    %c0_7 = arith.constant 0 : index
    %5 = vector.load %arg4[%c0_5, %c0_6, %c0_7] : memref<1x32x4xbf16, #tpu.memory_space<vmem>>, vector<1x32x4xbf16>
    %6 = vector.shape_cast %5 : vector<1x32x4xbf16> to vector<32x4xbf16>
    %7 = tpu.concatenate %2, %4, %6, %0 in 0 : vector<256x4xbf16>, vector<32x4xbf16>, vector<32x4xbf16>, vector<16x4xbf16> -> vector<336x4xbf16>
    %8 = vector.extract_strided_slice %7 {offsets = [0, 0], sizes = [256, 4], strides = [1, 1]} : vector<336x4xbf16> to vector<256x4xbf16>
    %9 = vector.extract_strided_slice %7 {offsets = [1, 0], sizes = [256, 4], strides = [1, 1]} : vector<336x4xbf16> to vector<256x4xbf16>
    %10 = vector.extract_strided_slice %7 {offsets = [2, 0], sizes = [256, 4], strides = [1, 1]} : vector<336x4xbf16> to vector<256x4xbf16>
    %11 = vector.extract_strided_slice %7 {offsets = [32, 0], sizes = [256, 4], strides = [1, 1]} : vector<336x4xbf16> to vector<256x4xbf16>
    %12 = vector.extract_strided_slice %7 {offsets = [33, 0], sizes = [256, 4], strides = [1, 1]} : vector<336x4xbf16> to vector<256x4xbf16>
    %13 = vector.extract_strided_slice %7 {offsets = [34, 0], sizes = [256, 4], strides = [1, 1]} : vector<336x4xbf16> to vector<256x4xbf16>
    %14 = vector.extract_strided_slice %7 {offsets = [64, 0], sizes = [256, 4], strides = [1, 1]} : vector<336x4xbf16> to vector<256x4xbf16>
    %15 = vector.extract_strided_slice %7 {offsets = [65, 0], sizes = [256, 4], strides = [1, 1]} : vector<336x4xbf16> to vector<256x4xbf16>
    %16 = vector.extract_strided_slice %7 {offsets = [66, 0], sizes = [256, 4], strides = [1, 1]} : vector<336x4xbf16> to vector<256x4xbf16>
    %17 = tpu.concatenate %8, %9, %10, %11, %12, %13, %14, %15, %16 in 1 : vector<256x4xbf16>, vector<256x4xbf16>, vector<256x4xbf16>, vector<256x4xbf16>, vector<256x4xbf16>, vector<256x4xbf16>, vector<256x4xbf16>, vector<256x4xbf16>, vector<256x4xbf16> -> vector<256x36xbf16>
    %c0_8 = arith.constant 0 : index
    %c0_9 = arith.constant 0 : index
    %18 = vector.load %arg5[%c0_8, %c0_9] : memref<36x128xbf16, #tpu.memory_space<vmem>>, vector<36x128xbf16>
    %cst_10 = arith.constant dense<0.000000e+00> : vector<256x128xf32>
    %19 = tpu.matmul %17, %18, %cst_10 {dimension_numbers = #tpu.dot_dimension_numbers<[1], [0], [0], [1], [0, 0, 1, 1], [], []>} : vector<256x36xbf16>, vector<36x128xbf16>, vector<256x128xf32> -> vector<256x128xf32>
    %c0_11 = arith.constant 0 : index
    %c0_12 = arith.constant 0 : index
    %20 = vector.load %arg6[%c0_11, %c0_12] : memref<1x128xf32, #tpu.memory_space<vmem>>, vector<1x128xf32>
    %21 = vector.broadcast %20 : vector<1x128xf32> to vector<256x128xf32>
    %22 = arith.addf %19, %21 : vector<256x128xf32>
    %cst_13 = arith.constant 0.000000e+00 : f32
    %23 = vector.broadcast %cst_13 : f32 to vector<256x128xf32>
    %24 = arith.maximumf %22, %23 : vector<256x128xf32>
    %c0_14 = arith.constant 0 : index
    %c0_15 = arith.constant 0 : index
    %c0_16 = arith.constant 0 : index
    %25 = vector.load %arg7[%c0_14, %c0_15, %c0_16] : memref<1x256x128xf32, #tpu.memory_space<vmem>>, vector<1x256x128xf32>
    %26 = vector.shape_cast %25 : vector<1x256x128xf32> to vector<256x128xf32>
    %27 = vector.shape_cast %24 : vector<256x128xf32> to vector<1x256x128xf32>
    tpu.vector_store %arg7[%c0_14, %c0_15, %c0_16], %27 {strides = array<i32>} : memref<1x256x128xf32, #tpu.memory_space<vmem>>, vector<1x256x128xf32>,
    return
  }
  func.func @transform_0(%arg0: i32, %arg1: i32) -> (i32, i32, i32) {
    %c0_i32 = arith.constant 0 : i32
    %c0_i32_0 = arith.constant 0 : i32
    return %arg0, %arg1, %c0_i32 : i32, i32, i32
  }
  func.func @transform_1(%arg0: i32, %arg1: i32) -> (i32, i32, i32) {
    %c1_i32 = arith.constant 1 : i32
    %0 = arith.addi %arg1, %c1_i32 : i32
    %c8_i32 = arith.constant 8 : i32
    %1 = arith.muli %0, %c8_i32 : i32
    %c0_i32 = arith.constant 0 : i32
    %2 = arith.addi %1, %c0_i32 : i32
    %c0_i32_0 = arith.constant 0 : i32
    %c0_i32_1 = arith.constant 0 : i32
    return %arg0, %2, %c0_i32_0 : i32, i32, i32
  }
  func.func @transform_2(%arg0: i32, %arg1: i32) -> (i32, i32, i32) {
    %c1_i32 = arith.constant 1 : i32
    %0 = arith.addi %arg1, %c1_i32 : i32
    %c8_i32 = arith.constant 8 : i32
    %1 = arith.muli %0, %c8_i32 : i32
    %c1_i32_0 = arith.constant 1 : i32
    %2 = arith.addi %1, %c1_i32_0 : i32
    %c0_i32 = arith.constant 0 : i32
    %c0_i32_1 = arith.constant 0 : i32
    return %arg0, %2, %c0_i32 : i32, i32, i32
  }
  func.func @transform_3(%arg0: i32, %arg1: i32) -> (i32, i32) {
    %c0_i32 = arith.constant 0 : i32
    %c0_i32_0 = arith.constant 0 : i32
    %c0_i32_1 = arith.constant 0 : i32
    return %c0_i32, %c0_i32_0 : i32, i32
  }
  func.func @transform_4(%arg0: i32, %arg1: i32) -> (i32, i32) {
    %c0_i32 = arith.constant 0 : i32
    %c0_i32_0 = arith.constant 0 : i32
    %c0_i32_1 = arith.constant 0 : i32
    return %c0_i32, %c0_i32_0 : i32, i32
  }
  func.func @transform_5(%arg0: i32, %arg1: i32) -> (i32, i32, i32) {
    %c0_i32 = arith.constant 0 : i32
    %c0_i32_0 = arith.constant 0 : i32
    return %arg0, %arg1, %c0_i32 : i32, i32, i32
  }
}

</mosaic_0001>

<llo_original>
// kernel: tpu_custom_call.1
$region0: #{tpu_custom_call.1}
  #allocation0 [shape = 'u32[]', space=smem, size = 0x4, offset = 0x4, fixed_abs, tag = 'smem constant byte address 0x4 - core index']
  #allocation1 [shape = 'u32[144,128]{1,0:T(1,128)}', space=vmem, size = 0x12000, scoped, tag = 'internal scratch']
  %s0 = inlined_call_operand.vmem [shape: bf16[2,576,4], index: 0, kind: input, shape index: {}]
  %s1 = inlined_call_operand.vmem [shape: bf16[2,576,4], index: 1, kind: input, shape index: {}]
  %s2 = inlined_call_operand.vmem [shape: bf16[2,576,4], index: 2, kind: input, shape index: {}]
  %s3 = inlined_call_operand.vmem [shape: bf16[36,128], index: 3, kind: input, shape index: {}]
  %s4 = inlined_call_operand.vmem [shape: f32[1,128], index: 4, kind: input, shape index: {}]
  %s5 = inlined_call_operand.hbm [shape: f32[2,512,128], index: 5, kind: output, shape index: {}]
  %s6 = sld [smem:[#allocation0]]
  $region53: #{tpu_custom_call.1} parent=0
    _
  %s8 = ssub.s32 1, %s6
  %s9 = scalar_select 0, %s8, %s6
  $region1: #{tpu_custom_call.1} parent=0
    #allocation2 [shape = 'u8[262144]{0}', space=vmem, size = 0x40000, scoped, tag = 'output window, operand 0']
    #allocation3 [shape = 's32[2]{0}', space=sflag, size = 0x8, scoped, tag = 'scoped memory for tpu_custom_call.1']
    %10 = vsyncpa [#allocation3], 0
    %s11 = scalar_lea.sflag [#allocation3], 1
    %12 = vsyncpa %s11, 0
    loop: start=0, step=1, limit=6
    $region2: #{tpu_custom_call.1} parent=1 // loop_pre_header
      _
    $region3: #{tpu_custom_call.1} parent=1 // loop_header
      %s14 = sphi 0, %s18
      %p15 = scmp.ge.s32.totalorder %s14, 6
      %s21 = sphi 0, %s33
      %s22 = sphi 0, %s29
      %s23 = sphi 0, %s21
      %s24 = sphi 0, %s22
      %s25 = sphi 0, %s23
      %s26 = sphi 0, %s24
      %s38 = sphi 0, %s40
      %s41 = sphi 0, %s38
      %s42 = sphi 0, %s41
      %s58 = sphi 0, %s42
      %s70 = sphi 0, %s72
      %s73 = sphi 0, %s70
      %s74 = sphi 0, %s73
      %s90 = sphi 0, %s74
      %s104 = sphi 0, %s106
      %s107 = sphi 0, %s104
      %s108 = sphi 0, %s107
      %s124 = sphi 0, %s108
      %s128 = sphi 0, %s128
      %s130 = sphi 0, %s128
      %s131 = sphi 0, %s130
      %s145 = sphi 0, %s131
      %s149 = sphi 0, %s149
      %s151 = sphi 0, %s149
      %s152 = sphi 0, %s151
      %s166 = sphi 0, %s152
      %s174 = sphi 0, %s176
      %s177 = sphi 0, %s174
      %s178 = sphi 0, %s177
      %s194 = sphi 0, %s178
    $region4: #{tpu_custom_call.1} parent=1 // loop_header_branch
      %17 = sbr.rel (%p15) target = $region8
    $region5: #{tpu_custom_call.1} parent=1 // loop_body
      %s19 = ssub.s32 %s14, 1
      %s20 = ssub.s32 %s14, 2
      %s27 = sadd.s32 1, %s22
      %p28 = scmp.ge.s32.totalorder %s27, 2
      %s29 = scalar_select %p28, 0, %s27
      %s30 = sadd.s32 1, %s21
      %s31 = scalar_select %p28, %s30, %s21
      %p32 = scmp.ge.s32.totalorder %s31, 2
      %s33 = scalar_select %p32, 0, %s31
      %s34 = ssub.s32 %s21, %s33
      %s35 = ssub.s32 %s22, %s29
      %s36 = sor.u32 %s34, %s35
      %p37 = scmp.eq.s32.totalorder %s36, 0
      %s39 = sadd.s32 %s38, 1
      %s40 = scalar_select %p37, %s38, %s39
      %p43 = pneg %p37
      %p44 = scmp.eq.s32.totalorder %s14, 3
      %p45 = por %p43, %p44
      %p46 = scmp.ne.s32.totalorder %s38, %s41
      %p47 = scmp.eq.s32.totalorder %s14, 0
      %p48 = por %p46, %p47
      %p49 = scmp.ne.s32.totalorder %s38, %s41
      %p50 = scmp.eq.s32.totalorder %s19, 3
      %p51 = por %p49, %p50
      %p52 = scmp.ne.s32.totalorder %s41, %s42
      %p53 = scmp.eq.s32.totalorder %s19, 0
      %p54 = por %p52, %p53
      %p55 = scmp.ne.s32.totalorder %s41, %s42
      %p56 = scmp.eq.s32.totalorder %s20, 3
      %p57 = por %p55, %p56
      %p59 = scmp.ne.s32.totalorder %s42, %s58
      %p60 = scmp.eq.s32.totalorder %s20, 0
      %p61 = por %p59, %p60
      %s62 = sadd.s32 %s22, 1
      %s63 = smul.u32 %s62, 8
      %s64 = sadd.s32 %s29, 1
      %s65 = smul.u32 %s64, 8
      %s66 = ssub.s32 %s21, %s33
      %s67 = ssub.s32 %s63, %s65
      %s68 = sor.u32 %s66, %s67
      %p69 = scmp.eq.s32.totalorder %s68, 0
      %s71 = sadd.s32 %s70, 1
      %s72 = scalar_select %p69, %s70, %s71
      %p75 = pneg %p69
      %p76 = scmp.eq.s32.totalorder %s14, 3
      %p77 = por %p75, %p76
      %p78 = scmp.ne.s32.totalorder %s70, %s73
      %p79 = scmp.eq.s32.totalorder %s14, 0
      %p80 = por %p78, %p79
      %p81 = scmp.ne.s32.totalorder %s70, %s73
      %p82 = scmp.eq.s32.totalorder %s19, 3
      %p83 = por %p81, %p82
      %p84 = scmp.ne.s32.totalorder %s73, %s74
      %p85 = scmp.eq.s32.totalorder %s19, 0
      %p86 = por %p84, %p85
      %p87 = scmp.ne.s32.totalorder %s73, %s74
      %p88 = scmp.eq.s32.totalorder %s20, 3
      %p89 = por %p87, %p88
      %p91 = scmp.ne.s32.totalorder %s74, %s90
      %p92 = scmp.eq.s32.totalorder %s20, 0
      %p93 = por %p91, %p92
      %s94 = sadd.s32 %s22, 1
      %s95 = smul.u32 %s94, 8
      %s96 = sadd.s32 %s95, 1
      %s97 = sadd.s32 %s29, 1
      %s98 = smul.u32 %s97, 8
      %s99 = sadd.s32 %s98, 1
      %s100 = ssub.s32 %s21, %s33
      %s101 = ssub.s32 %s96, %s99
      %s102 = sor.u32 %s100, %s101
      %p103 = scmp.eq.s32.totalorder %s102, 0
      %s105 = sadd.s32 %s104, 1
      %s106 = scalar_select %p103, %s104, %s105
      %p109 = pneg %p103
      %p110 = scmp.eq.s32.totalorder %s14, 3
      %p111 = por %p109, %p110
      %p112 = scmp.ne.s32.totalorder %s104, %s107
      %p113 = scmp.eq.s32.totalorder %s14, 0
      %p114 = por %p112, %p113
      %p115 = scmp.ne.s32.totalorder %s104, %s107
      %p116 = scmp.eq.s32.totalorder %s19, 3
      %p117 = por %p115, %p116
      %p118 = scmp.ne.s32.totalorder %s107, %s108
      %p119 = scmp.eq.s32.totalorder %s19, 0
      %p120 = por %p118, %p119
      %p121 = scmp.ne.s32.totalorder %s107, %s108
      %p122 = scmp.eq.s32.totalorder %s20, 3
      %p123 = por %p121, %p122
      %p125 = scmp.ne.s32.totalorder %s108, %s124
      %p126 = scmp.eq.s32.totalorder %s20, 0
      %p127 = por %p125, %p126
      %s129 = sadd.s32 %s128, 1
      %p132 = scmp.eq.s32.totalorder %s14, 3
      %p133 = scmp.ne.s32.totalorder %s128, %s130
      %p134 = scmp.eq.s32.totalorder %s14, 0
      %p135 = por %p133, %p134
      %p136 = scmp.ne.s32.totalorder %s128, %s130
      %p137 = scmp.eq.s32.totalorder %s19, 3
      %p138 = por %p136, %p137
      %p139 = scmp.ne.s32.totalorder %s130, %s131
      %p140 = scmp.eq.s32.totalorder %s19, 0
      %p141 = por %p139, %p140
      %p142 = scmp.ne.s32.totalorder %s130, %s131
      %p143 = scmp.eq.s32.totalorder %s20, 3
      %p144 = por %p142, %p143
      %p146 = scmp.ne.s32.totalorder %s131, %s145
      %p147 = scmp.eq.s32.totalorder %s20, 0
      %p148 = por %p146, %p147
      %s150 = sadd.s32 %s149, 1
      %p153 = scmp.eq.s32.totalorder %s14, 3
      %p154 = scmp.ne.s32.totalorder %s149, %s151
      %p155 = scmp.eq.s32.totalorder %s14, 0
      %p156 = por %p154, %p155
      %p157 = scmp.ne.s32.totalorder %s149, %s151
      %p158 = scmp.eq.s32.totalorder %s19, 3
      %p159 = por %p157, %p158
      %p160 = scmp.ne.s32.totalorder %s151, %s152
      %p161 = scmp.eq.s32.totalorder %s19, 0
      %p162 = por %p160, %p161
      %p163 = scmp.ne.s32.totalorder %s151, %s152
      %p164 = scmp.eq.s32.totalorder %s20, 3
      %p165 = por %p163, %p164
      %p167 = scmp.ne.s32.totalorder %s152, %s166
      %p168 = scmp.eq.s32.totalorder %s20, 0
      %p169 = por %p167, %p168
      %s170 = ssub.s32 %s21, %s33
      %s171 = ssub.s32 %s22, %s29
      %s172 = sor.u32 %s170, %s171
      %p173 = scmp.eq.s32.totalorder %s172, 0
      %s175 = sadd.s32 %s174, 1
      %s176 = scalar_select %p173, %s174, %s175
      %p179 = pneg %p173
      %p180 = scmp.eq.s32.totalorder %s14, 3
      %p181 = por %p179, %p180
      %p182 = scmp.ne.s32.totalorder %s174, %s177
      %p183 = scmp.eq.s32.totalorder %s14, 0
      %p184 = por %p182, %p183
      %p185 = scmp.ne.s32.totalorder %s174, %s177
      %p186 = scmp.eq.s32.totalorder %s19, 3
      %p187 = por %p185, %p186
      %p188 = scmp.ne.s32.totalorder %s177, %s178
      %p189 = scmp.eq.s32.totalorder %s19, 0
      %p190 = por %p188, %p189
      %p191 = scmp.ne.s32.totalorder %s177, %s178
      %p192 = scmp.eq.s32.totalorder %s20, 3
      %p193 = por %p191, %p192
      %p195 = scmp.ne.s32.totalorder %s178, %s194
      %p196 = scmp.eq.s32.totalorder %s20, 0
      %p197 = por %p195, %p196
      %p198 = scmp.le.s32.totalorder 1, %s14
      %p199 = scmp.lt.s32.totalorder %s14, 5
      %p200 = pnand %p198, %p199
      %p201 = pneg %p200
      // Predicated region
      $region9: #{tpu_custom_call.1} parent=5 // pred_check
        _
      $region10: #{tpu_custom_call.1} parent=5 // pred_check_branch
        %203 = sbr.rel (%p200) target = $region12
      $region11: #{tpu_custom_call.1} parent=5 // pred_region
        %s204 = ssub.s32 %s14, 1
        // Predicated region
        $region13: #{tpu_custom_call.1} parent=11 // pred_check
          %p205 = pneg %p141
        $region14: #{tpu_custom_call.1} parent=11 // pred_check_branch
          %207 = sbr.rel (%p205) target = $region16
        $region15: #{tpu_custom_call.1} parent=11 // pred_region
          _
        $region16: #{tpu_custom_call.1} parent=11 // pred_fallthru
          _
        // Predicated region
        $region17: #{tpu_custom_call.1} parent=11 // pred_check
          %p208 = pneg %p162
        $region18: #{tpu_custom_call.1} parent=11 // pred_check_branch
          %210 = sbr.rel (%p208) target = $region20
        $region19: #{tpu_custom_call.1} parent=11 // pred_region
          _
        $region20: #{tpu_custom_call.1} parent=11 // pred_fallthru
          _
      $region12: #{tpu_custom_call.1} parent=5 // pred_fallthru
        _
      %p211 = scmp.lt.s32.totalorder %s14, 4
      // Predicated region
      $region21: #{tpu_custom_call.1} parent=5 // pred_check
        %p212 = pneg %p211
      $region22: #{tpu_custom_call.1} parent=5 // pred_check_branch
        %214 = sbr.rel (%p212) target = $region24
      $region23: #{tpu_custom_call.1} parent=5 // pred_region
        // Predicated region
        $region25: #{tpu_custom_call.1} parent=23 // pred_check
          %p215 = pneg %p48
        $region26: #{tpu_custom_call.1} parent=23 // pred_check_branch
          %217 = sbr.rel (%p215) target = $region28
        $region27: #{tpu_custom_call.1} parent=23 // pred_region
          %s218 = smul.u32 32, %s22
          %s219 = ssub.s32 72, %s218
          %p220 = scmp.lt.s32.totalorder %s219, 32
          %s221 = scalar_select %p220, %s219, 32
          %s222 = smul.u32 64, %s221
          %p223 = scmp.lt.s32.totalorder %s21, 1
          %s224 = scalar_select %p223, %s21, 1
          %p225 = scmp.lt.s32.totalorder %s218, 71
          %s226 = scalar_select %p225, %s218, 71
          %s227 = smul.addr %s224, 72
          %s228 = sadd.s32 %s226, %s227
          %s229 = smul.addr %s228, 4
          %s230 = scalar_lea.vmem %s0, %s229
          %s231 = smul.u32 32, %s22
          %s232 = ssub.s32 72, %s231
          %p233 = scmp.lt.s32.totalorder %s232, 32
          %s234 = scalar_select %p233, %s232, 32
          %s235 = smul.u32 64, %s234
        $region28: #{tpu_custom_call.1} parent=23 // pred_fallthru
          _
        // Predicated region
        $region29: #{tpu_custom_call.1} parent=23 // pred_check
          %p236 = pneg %p80
        $region30: #{tpu_custom_call.1} parent=23 // pred_check_branch
          %238 = sbr.rel (%p236) target = $region32
        $region31: #{tpu_custom_call.1} parent=23 // pred_region
          %s239 = sadd.s32 %s22, 1
          %s240 = smul.u32 %s239, 8
          %s241 = smul.u32 4, %s240
          %p242 = scmp.lt.s32.totalorder %s21, 1
          %s243 = scalar_select %p242, %s21, 1
          %p244 = scmp.lt.s32.totalorder %s241, 71
          %s245 = scalar_select %p244, %s241, 71
          %s246 = smul.addr %s243, 72
          %s247 = sadd.s32 %s245, %s246
          %s248 = smul.addr %s247, 4
          %s249 = scalar_lea.vmem %s1, %s248
          %s250 = sadd.s32 %s22, 1
          %s251 = smul.u32 %s250, 8
          %s252 = smul.u32 4, %s251
        $region32: #{tpu_custom_call.1} parent=23 // pred_fallthru
          _
        // Predicated region
        $region33: #{tpu_custom_call.1} parent=23 // pred_check
          %p253 = pneg %p114
        $region34: #{tpu_custom_call.1} parent=23 // pred_check_branch
          %255 = sbr.rel (%p253) target = $region36
        $region35: #{tpu_custom_call.1} parent=23 // pred_region
          %s256 = sadd.s32 %s22, 1
          %s257 = smul.u32 %s256, 8
          %s258 = sadd.s32 %s257, 1
          %s259 = smul.u32 4, %s258
          %p260 = scmp.lt.s32.totalorder %s21, 1
          %s261 = scalar_select %p260, %s21, 1
          %p262 = scmp.lt.s32.totalorder %s259, 71
          %s263 = scalar_select %p262, %s259, 71
          %s264 = smul.addr %s261, 72
          %s265 = sadd.s32 %s263, %s264
          %s266 = smul.addr %s265, 4
          %s267 = scalar_lea.vmem %s2, %s266
          %s268 = sadd.s32 %s22, 1
          %s269 = smul.u32 %s268, 8
          %s270 = sadd.s32 %s269, 1
          %s271 = smul.u32 4, %s270
        $region36: #{tpu_custom_call.1} parent=23 // pred_fallthru
          _
      $region24: #{tpu_custom_call.1} parent=5 // pred_fallthru
        _
      %p272 = scmp.le.s32.totalorder 1, %s14
      %p273 = scmp.lt.s32.totalorder %s14, 5
      %p274 = pnand %p272, %p273
      %p275 = pneg %p274
      // Predicated region
      $region37: #{tpu_custom_call.1} parent=5 // pred_check
        _
      $region38: #{tpu_custom_call.1} parent=5 // pred_check_branch
        %277 = sbr.rel (%p274) target = $region40
      $region39: #{tpu_custom_call.1} parent=5 // pred_region
        %s278 = ssub.s32 %s14, 1
        %s279 = smul.u32 32, %s24
        %s280 = ssub.s32 72, %s279
        %p281 = scmp.lt.s32.totalorder %s280, 32
        %s282 = scalar_select %p281, %s280, 32
        %s283 = smul.u32 64, %s282
        %p284 = scmp.lt.s32.totalorder %s23, 1
        %s285 = scalar_select %p284, %s23, 1
        %p286 = scmp.lt.s32.totalorder %s279, 71
        %s287 = scalar_select %p286, %s279, 71
        %s288 = smul.addr %s285, 72
        %s289 = sadd.s32 %s287, %s288
        %s290 = smul.addr %s289, 4
        %s291 = scalar_lea.vmem %s0, %s290
        %p292 = pneg %p54
        %p293 = pneg %p51
        %s294 = sadd.s32 %s24, 1
        %s295 = smul.u32 %s294, 8
        %s296 = smul.u32 4, %s295
        %p297 = scmp.lt.s32.totalorder %s23, 1
        %s298 = scalar_select %p297, %s23, 1
        %p299 = scmp.lt.s32.totalorder %s296, 71
        %s300 = scalar_select %p299, %s296, 71
        %s301 = smul.addr %s298, 72
        %s302 = sadd.s32 %s300, %s301
        %s303 = smul.addr %s302, 4
        %s304 = scalar_lea.vmem %s1, %s303
        %p305 = pneg %p86
        %p306 = pneg %p83
        %s307 = sadd.s32 %s24, 1
        %s308 = smul.u32 %s307, 8
        %s309 = sadd.s32 %s308, 1
        %s310 = smul.u32 4, %s309
        %p311 = scmp.lt.s32.totalorder %s23, 1
        %s312 = scalar_select %p311, %s23, 1
        %p313 = scmp.lt.s32.totalorder %s310, 71
        %s314 = scalar_select %p313, %s310, 71
        %s315 = smul.addr %s312, 72
        %s316 = sadd.s32 %s314, %s315
        %s317 = smul.addr %s316, 4
        %s318 = scalar_lea.vmem %s2, %s317
        %p319 = pneg %p120
        %p320 = pneg %p117
        %p321 = pneg %p141
        %p322 = pneg %p138
        %p323 = pneg %p162
        %p324 = pneg %p159
        %p325 = pneg %p190
        %p326 = pneg %p187
        %s327 = sand.u32 %s177, 1
        %s328 = scalar_lea.sflag [#allocation3], %s327
        %s329 = sand.u32 %s177, 1
        %s330 = smul.addr %s329, 256
        %s331 = scalar_lea.vmem [#allocation2], %s330
        %s332 = smul.u32 32, %s24
        %s333 = ssub.s32 72, %s332
        %p334 = scmp.lt.s32.totalorder %s333, 32
        %s335 = scalar_select %p334, %s333, 32
        %s336 = smul.u32 64, %s335
        %p337 = scmp.lt.s32.totalorder %s23, 1
        %s338 = scalar_select %p337, %s23, 1
        %p339 = scmp.lt.s32.totalorder %s332, 71
        %s340 = scalar_select %p339, %s332, 71
        %s341 = smul.addr %s338, 72
        %s342 = sadd.s32 %s340, %s341
        %s343 = smul.addr %s342, 4
        %s344 = scalar_lea.vmem %s0, %s343
        %s345 = smul.u32 32, %s24
        %s346 = ssub.s32 72, %s345
        %p347 = scmp.lt.s32.totalorder %s346, 32
        %s348 = scalar_select %p347, %s346, 32
        %s349 = smul.u32 64, %s348
        %s350 = sadd.s32 %s24, 1
        %s351 = smul.u32 %s350, 8
        %s352 = smul.u32 4, %s351
        %p353 = scmp.lt.s32.totalorder %s23, 1
        %s354 = scalar_select %p353, %s23, 1
        %p355 = scmp.lt.s32.totalorder %s352, 71
        %s356 = scalar_select %p355, %s352, 71
        %s357 = smul.addr %s354, 72
        %s358 = sadd.s32 %s356, %s357
        %s359 = smul.addr %s358, 4
        %s360 = scalar_lea.vmem %s1, %s359
        %s361 = sadd.s32 %s24, 1
        %s362 = smul.u32 %s361, 8
        %s363 = smul.u32 4, %s362
        %s364 = sadd.s32 %s24, 1
        %s365 = smul.u32 %s364, 8
        %s366 = sadd.s32 %s365, 1
        %s367 = smul.u32 4, %s366
        %p368 = scmp.lt.s32.totalorder %s23, 1
        %s369 = scalar_select %p368, %s23, 1
        %p370 = scmp.lt.s32.totalorder %s367, 71
        %s371 = scalar_select %p370, %s367, 71
        %s372 = smul.addr %s369, 72
        %s373 = sadd.s32 %s371, %s372
        %s374 = smul.addr %s373, 4
        %s375 = scalar_lea.vmem %s2, %s374
        %s376 = sadd.s32 %s24, 1
        %s377 = smul.u32 %s376, 8
        %s378 = sadd.s32 %s377, 1
        %s379 = smul.u32 4, %s378
        %s380 = smul.u32 32, %s24
        %v382 = vld [vmem:[%s344] sm:$0xf]
        %v383 = vld [vmem:[%s344 + $0x4] sm:$0xf]
        %v384 = vld [vmem:[%s344 + $0x8] sm:$0xf]
        %v385 = vld [vmem:[%s344 + $0xc] sm:$0xf]
        %v386 = vld [vmem:[%s344 + $0x10] sm:$0xf]
        %v387 = vld [vmem:[%s344 + $0x14] sm:$0xf]
        %v388 = vld [vmem:[%s344 + $0x18] sm:$0xf]
        %v389 = vld [vmem:[%s344 + $0x1c] sm:$0xf]
        %v390 = vld [vmem:[%s344 + $0x20] sm:$0xf]
        %v391 = vld [vmem:[%s344 + $0x24] sm:$0xf]
        %v392 = vld [vmem:[%s344 + $0x28] sm:$0xf]
        %v393 = vld [vmem:[%s344 + $0x2c] sm:$0xf]
        %v394 = vld [vmem:[%s344 + $0x30] sm:$0xf]
        %v395 = vld [vmem:[%s344 + $0x34] sm:$0xf]
        %v396 = vld [vmem:[%s344 + $0x38] sm:$0xf]
        %v397 = vld [vmem:[%s344 + $0x3c] sm:$0xf]
        %v398 = vld [vmem:[%s344 + $0x40] sm:$0xf]
        %v399 = vld [vmem:[%s344 + $0x44] sm:$0xf]
        %v400 = vld [vmem:[%s344 + $0x48] sm:$0xf]
        %v401 = vld [vmem:[%s344 + $0x4c] sm:$0xf]
        %v402 = vld [vmem:[%s344 + $0x50] sm:$0xf]
        %v403 = vld [vmem:[%s344 + $0x54] sm:$0xf]
        %v404 = vld [vmem:[%s344 + $0x58] sm:$0xf]
        %v405 = vld [vmem:[%s344 + $0x5c] sm:$0xf]
        %v406 = vld [vmem:[%s344 + $0x60] sm:$0xf]
        %v407 = vld [vmem:[%s344 + $0x64] sm:$0xf]
        %v408 = vld [vmem:[%s344 + $0x68] sm:$0xf]
        %v409 = vld [vmem:[%s344 + $0x6c] sm:$0xf]
        %v410 = vld [vmem:[%s344 + $0x70] sm:$0xf]
        %v411 = vld [vmem:[%s344 + $0x74] sm:$0xf]
        %v412 = vld [vmem:[%s344 + $0x78] sm:$0xf]
        %v413 = vld [vmem:[%s344 + $0x7c] sm:$0xf]
        %v414 = vld [vmem:[%s360] sm:$0xf]
        %v415 = vld [vmem:[%s360 + $0x4] sm:$0xf]
        %v416 = vld [vmem:[%s360 + $0x8] sm:$0xf]
        %v417 = vld [vmem:[%s360 + $0xc] sm:$0xf]
        %v418 = vld [vmem:[%s375] sm:$0xf]
        %v419 = vld [vmem:[%s375 + $0x4] sm:$0xf]
        %v420 = vld [vmem:[%s375 + $0x8] sm:$0xf]
        %v421 = vld [vmem:[%s375 + $0xc] sm:$0xf]
        %v454 = vunpack.c.l.b16 %v382
        %v455 = vunpack.c.l.b16 %v383
        %v456 = vunpack.c.l.b16 %v384
        %v457 = vunpack.c.l.b16 %v385
        %v458 = vunpack.c.l.b16 %v386
        %v459 = vunpack.c.l.b16 %v387
        %v460 = vunpack.c.l.b16 %v388
        %v461 = vunpack.c.l.b16 %v389
        %v462 = vunpack.c.l.b16 %v390
        %v463 = vunpack.c.l.b16 %v391
        %v464 = vunpack.c.l.b16 %v392
        %v465 = vunpack.c.l.b16 %v393
        %v466 = vunpack.c.l.b16 %v394
        %v467 = vunpack.c.l.b16 %v395
        %v468 = vunpack.c.l.b16 %v396
        %v469 = vunpack.c.l.b16 %v397
        %v470 = vunpack.c.l.b16 %v398
        %v471 = vunpack.c.l.b16 %v399
        %v472 = vunpack.c.l.b16 %v400
        %v473 = vunpack.c.l.b16 %v401
        %v474 = vunpack.c.l.b16 %v402
        %v475 = vunpack.c.l.b16 %v403
        %v476 = vunpack.c.l.b16 %v404
        %v477 = vunpack.c.l.b16 %v405
        %v478 = vunpack.c.l.b16 %v406
        %v479 = vunpack.c.l.b16 %v407
        %v480 = vunpack.c.l.b16 %v408
        %v481 = vunpack.c.l.b16 %v409
        %v482 = vunpack.c.l.b16 %v410
        %v483 = vunpack.c.l.b16 %v411
        %v484 = vunpack.c.l.b16 %v412
        %v485 = vunpack.c.l.b16 %v413
        %v486 = vpack.c.b16 %v455, %v454
        %v487 = vpack.c.b16 %v457, %v456
        %v488 = vpack.c.b16 %v459, %v458
        %v489 = vpack.c.b16 %v461, %v460
        %v490 = vpack.c.b16 %v463, %v462
        %v491 = vpack.c.b16 %v465, %v464
        %v492 = vpack.c.b16 %v467, %v466
        %v493 = vpack.c.b16 %v469, %v468
        %v494 = vpack.c.b16 %v471, %v470
        %v495 = vpack.c.b16 %v473, %v472
        %v496 = vpack.c.b16 %v475, %v474
        %v497 = vpack.c.b16 %v477, %v476
        %v498 = vpack.c.b16 %v479, %v478
        %v499 = vpack.c.b16 %v481, %v480
        %v500 = vpack.c.b16 %v483, %v482
        %v501 = vpack.c.b16 %v485, %v484
        %v506 = vunpack.c.l.b16 %v414
        %v507 = vunpack.c.l.b16 %v415
        %v508 = vunpack.c.l.b16 %v416
        %v509 = vunpack.c.l.b16 %v417
        %v510 = vpack.c.b16 %v507, %v506
        %v511 = vpack.c.b16 %v509, %v508
        %v516 = vunpack.c.l.b16 %v418
        %v517 = vunpack.c.l.b16 %v419
        %v518 = vunpack.c.l.b16 %v420
        %v519 = vunpack.c.l.b16 %v421
        %v520 = vpack.c.b16 %v517, %v516
        %v521 = vpack.c.b16 %v519, %v518
        %vm522 = vsmask.f32 7424
        %v524 = vshrl.u32 %v486, 16
        %v526 = vshll.u32 %v486, 16
        %v528 = vrot.slane %v526, 1
        %v529 = vor.u32 %v524, %v528
        %v531 = vshll.u32 %v487, 16
        %v533 = vrot.slane %v531, 1
        %v534 = vsel %vm522, %v529, %v533
        %v535 = vshrl.u32 %v487, 16
        %v537 = vor.u32 %v535, %v533
        %v539 = vshll.u32 %v488, 16
        %v541 = vrot.slane %v539, 1
        %v542 = vsel %vm522, %v537, %v541
        %v543 = vshrl.u32 %v488, 16
        %v545 = vor.u32 %v543, %v541
        %v547 = vshll.u32 %v489, 16
        %v549 = vrot.slane %v547, 1
        %v550 = vsel %vm522, %v545, %v549
        %v551 = vshrl.u32 %v489, 16
        %v553 = vor.u32 %v551, %v549
        %v555 = vshll.u32 %v490, 16
        %v557 = vrot.slane %v555, 1
        %v558 = vsel %vm522, %v553, %v557
        %v559 = vshrl.u32 %v490, 16
        %v561 = vor.u32 %v559, %v557
        %v563 = vshll.u32 %v491, 16
        %v565 = vrot.slane %v563, 1
        %v566 = vsel %vm522, %v561, %v565
        %v567 = vshrl.u32 %v491, 16
        %v569 = vor.u32 %v567, %v565
        %v571 = vshll.u32 %v492, 16
        %v573 = vrot.slane %v571, 1
        %v574 = vsel %vm522, %v569, %v573
        %v575 = vshrl.u32 %v492, 16
        %v577 = vor.u32 %v575, %v573
        %v579 = vshll.u32 %v493, 16
        %v581 = vrot.slane %v579, 1
        %v582 = vsel %vm522, %v577, %v581
        %v583 = vshrl.u32 %v493, 16
        %v585 = vor.u32 %v583, %v581
        %v587 = vshll.u32 %v494, 16
        %v589 = vrot.slane %v587, 1
        %v590 = vsel %vm522, %v585, %v589
        %v591 = vshrl.u32 %v494, 16
        %v593 = vor.u32 %v591, %v589
        %v595 = vshll.u32 %v495, 16
        %v597 = vrot.slane %v595, 1
        %v598 = vsel %vm522, %v593, %v597
        %v599 = vshrl.u32 %v495, 16
        %v601 = vor.u32 %v599, %v597
        %v603 = vshll.u32 %v496, 16
        %v605 = vrot.slane %v603, 1
        %v606 = vsel %vm522, %v601, %v605
        %v607 = vshrl.u32 %v496, 16
        %v609 = vor.u32 %v607, %v605
        %v611 = vshll.u32 %v497, 16
        %v613 = vrot.slane %v611, 1
        %v614 = vsel %vm522, %v609, %v613
        %v615 = vshrl.u32 %v497, 16
        %v617 = vor.u32 %v615, %v613
        %v619 = vshll.u32 %v498, 16
        %v621 = vrot.slane %v619, 1
        %v622 = vsel %vm522, %v617, %v621
        %v623 = vshrl.u32 %v498, 16
        %v625 = vor.u32 %v623, %v621
        %v627 = vshll.u32 %v499, 16
        %v629 = vrot.slane %v627, 1
        %v630 = vsel %vm522, %v625, %v629
        %v631 = vshrl.u32 %v499, 16
        %v633 = vor.u32 %v631, %v629
        %v635 = vshll.u32 %v500, 16
        %v637 = vrot.slane %v635, 1
        %v638 = vsel %vm522, %v633, %v637
        %v639 = vshrl.u32 %v500, 16
        %v641 = vor.u32 %v639, %v637
        %v643 = vshll.u32 %v501, 16
        %v645 = vrot.slane %v643, 1
        %v646 = vsel %vm522, %v641, %v645
        %v647 = vshrl.u32 %v501, 16
        %v649 = vor.u32 %v647, %v645
        %v651 = vshll.u32 %v510, 16
        %v653 = vrot.slane %v651, 1
        %v654 = vsel %vm522, %v649, %v653
        %655 = vrot.lane.b32.xlu0 %v534, 4
        %v656 = vpop.permute.xlu0 %655
        %657 = vrot.lane.b32.xlu0 %v542, 4
        %v658 = vpop.permute.xlu0 %657
        %659 = vrot.lane.b32.xlu0 %v550, 4
        %v660 = vpop.permute.xlu0 %659
        %661 = vrot.lane.b32.xlu0 %v558, 4
        %v662 = vpop.permute.xlu0 %661
        %663 = vrot.lane.b32.xlu0 %v566, 4
        %v664 = vpop.permute.xlu0 %663
        %665 = vrot.lane.b32.xlu0 %v574, 4
        %v666 = vpop.permute.xlu0 %665
        %667 = vrot.lane.b32.xlu0 %v582, 4
        %v668 = vpop.permute.xlu0 %667
        %669 = vrot.lane.b32.xlu0 %v590, 4
        %v670 = vpop.permute.xlu0 %669
        %671 = vrot.lane.b32.xlu0 %v598, 4
        %v672 = vpop.permute.xlu0 %671
        %673 = vrot.lane.b32.xlu0 %v606, 4
        %v674 = vpop.permute.xlu0 %673
        %675 = vrot.lane.b32.xlu0 %v614, 4
        %v676 = vpop.permute.xlu0 %675
        %677 = vrot.lane.b32.xlu0 %v622, 4
        %v678 = vpop.permute.xlu0 %677
        %679 = vrot.lane.b32.xlu0 %v630, 4
        %v680 = vpop.permute.xlu0 %679
        %681 = vrot.lane.b32.xlu0 %v638, 4
        %v682 = vpop.permute.xlu0 %681
        %683 = vrot.lane.b32.xlu0 %v646, 4
        %v684 = vpop.permute.xlu0 %683
        %685 = vrot.lane.b32.xlu0 %v654, 4
        %v686 = vpop.permute.xlu0 %685
        %vm687 = vcmask 1046528
        %v688 = vrot.slane %v486, 1
        %v689 = vrot.slane %v487, 1
        %v690 = vsel %vm687, %v688, %v689
        %v691 = vrot.slane %v488, 1
        %v692 = vsel %vm687, %v689, %v691
        %v693 = vrot.slane %v489, 1
        %v694 = vsel %vm687, %v691, %v693
        %v695 = vrot.slane %v490, 1
        %v696 = vsel %vm687, %v693, %v695
        %v697 = vrot.slane %v491, 1
        %v698 = vsel %vm687, %v695, %v697
        %v699 = vrot.slane %v492, 1
        %v700 = vsel %vm687, %v697, %v699
        %v701 = vrot.slane %v493, 1
        %v702 = vsel %vm687, %v699, %v701
        %v703 = vrot.slane %v494, 1
        %v704 = vsel %vm687, %v701, %v703
        %v705 = vrot.slane %v495, 1
        %v706 = vsel %vm687, %v703, %v705
        %v707 = vrot.slane %v496, 1
        %v708 = vsel %vm687, %v705, %v707
        %v709 = vrot.slane %v497, 1
        %v710 = vsel %vm687, %v707, %v709
        %v711 = vrot.slane %v498, 1
        %v712 = vsel %vm687, %v709, %v711
        %v713 = vrot.slane %v499, 1
        %v714 = vsel %vm687, %v711, %v713
        %v715 = vrot.slane %v500, 1
        %v716 = vsel %vm687, %v713, %v715
        %v717 = vrot.slane %v501, 1
        %v718 = vsel %vm687, %v715, %v717
        %v719 = vrot.slane %v510, 1
        %v720 = vsel %vm687, %v717, %v719
        %721 = vrot.lane.b32.xlu0 %v690, 8
        %v722 = vpop.permute.xlu0 %721
        %723 = vrot.lane.b32.xlu0 %v692, 8
        %v724 = vpop.permute.xlu0 %723
        %725 = vrot.lane.b32.xlu0 %v694, 8
        %v726 = vpop.permute.xlu0 %725
        %727 = vrot.lane.b32.xlu0 %v696, 8
        %v728 = vpop.permute.xlu0 %727
        %729 = vrot.lane.b32.xlu0 %v698, 8
        %v730 = vpop.permute.xlu0 %729
        %731 = vrot.lane.b32.xlu0 %v700, 8
        %v732 = vpop.permute.xlu0 %731
        %733 = vrot.lane.b32.xlu0 %v702, 8
        %v734 = vpop.permute.xlu0 %733
        %735 = vrot.lane.b32.xlu0 %v704, 8
        %v736 = vpop.permute.xlu0 %735
        %737 = vrot.lane.b32.xlu0 %v706, 8
        %v738 = vpop.permute.xlu0 %737
        %739 = vrot.lane.b32.xlu0 %v708, 8
        %v740 = vpop.permute.xlu0 %739
        %741 = vrot.lane.b32.xlu0 %v710, 8
        %v742 = vpop.permute.xlu0 %741
        %743 = vrot.lane.b32.xlu0 %v712, 8
        %v744 = vpop.permute.xlu0 %743
        %745 = vrot.lane.b32.xlu0 %v714, 8
        %v746 = vpop.permute.xlu0 %745
        %747 = vrot.lane.b32.xlu0 %v716, 8
        %v748 = vpop.permute.xlu0 %747
        %749 = vrot.lane.b32.xlu0 %v718, 8
        %v750 = vpop.permute.xlu0 %749
        %751 = vrot.lane.b32.xlu0 %v720, 8
        %v752 = vpop.permute.xlu0 %751
        %753 = vrot.lane.b32.xlu0 %v488, 12
        %v754 = vpop.permute.xlu0 %753
        %755 = vrot.lane.b32.xlu0 %v489, 12
        %v756 = vpop.permute.xlu0 %755
        %757 = vrot.lane.b32.xlu0 %v490, 12
        %v758 = vpop.permute.xlu0 %757
        %759 = vrot.lane.b32.xlu0 %v491, 12
        %v760 = vpop.permute.xlu0 %759
        %761 = vrot.lane.b32.xlu0 %v492, 12
        %v762 = vpop.permute.xlu0 %761
        %763 = vrot.lane.b32.xlu0 %v493, 12
        %v764 = vpop.permute.xlu0 %763
        %765 = vrot.lane.b32.xlu0 %v494, 12
        %v766 = vpop.permute.xlu0 %765
        %767 = vrot.lane.b32.xlu0 %v495, 12
        %v768 = vpop.permute.xlu0 %767
        %769 = vrot.lane.b32.xlu0 %v496, 12
        %v770 = vpop.permute.xlu0 %769
        %771 = vrot.lane.b32.xlu0 %v497, 12
        %v772 = vpop.permute.xlu0 %771
        %773 = vrot.lane.b32.xlu0 %v498, 12
        %v774 = vpop.permute.xlu0 %773
        %775 = vrot.lane.b32.xlu0 %v499, 12
        %v776 = vpop.permute.xlu0 %775
        %777 = vrot.lane.b32.xlu0 %v500, 12
        %v778 = vpop.permute.xlu0 %777
        %779 = vrot.lane.b32.xlu0 %v501, 12
        %v780 = vpop.permute.xlu0 %779
        %781 = vrot.lane.b32.xlu0 %v510, 12
        %v782 = vpop.permute.xlu0 %781
        %783 = vrot.lane.b32.xlu0 %v511, 12
        %v784 = vpop.permute.xlu0 %783
        %v785 = vshrl.u32 %v510, 16
        %v787 = vor.u32 %v785, %v653
        %v789 = vshll.u32 %v511, 16
        %v791 = vrot.slane %v789, 1
        %v792 = vsel %vm522, %v787, %v791
        %v793 = vshrl.u32 %v511, 16
        %v795 = vor.u32 %v793, %v791
        %v797 = vshll.u32 %v520, 16
        %v799 = vrot.slane %v797, 1
        %v800 = vsel %vm522, %v795, %v799
        %801 = vrot.lane.b32.xlu0 %v550, 16
        %v802 = vpop.permute.xlu0 %801
        %803 = vrot.lane.b32.xlu0 %v558, 16
        %v804 = vpop.permute.xlu0 %803
        %805 = vrot.lane.b32.xlu0 %v566, 16
        %v806 = vpop.permute.xlu0 %805
        %807 = vrot.lane.b32.xlu0 %v574, 16
        %v808 = vpop.permute.xlu0 %807
        %809 = vrot.lane.b32.xlu0 %v582, 16
        %v810 = vpop.permute.xlu0 %809
        %811 = vrot.lane.b32.xlu0 %v590, 16
        %v812 = vpop.permute.xlu0 %811
        %813 = vrot.lane.b32.xlu0 %v598, 16
        %v814 = vpop.permute.xlu0 %813
        %815 = vrot.lane.b32.xlu0 %v606, 16
        %v816 = vpop.permute.xlu0 %815
        %817 = vrot.lane.b32.xlu0 %v614, 16
        %v818 = vpop.permute.xlu0 %817
        %819 = vrot.lane.b32.xlu0 %v622, 16
        %v820 = vpop.permute.xlu0 %819
        %821 = vrot.lane.b32.xlu0 %v630, 16
        %v822 = vpop.permute.xlu0 %821
        %823 = vrot.lane.b32.xlu0 %v638, 16
        %v824 = vpop.permute.xlu0 %823
        %825 = vrot.lane.b32.xlu0 %v646, 16
        %v826 = vpop.permute.xlu0 %825
        %827 = vrot.lane.b32.xlu0 %v654, 16
        %v828 = vpop.permute.xlu0 %827
        %829 = vrot.lane.b32.xlu0 %v792, 16
        %v830 = vpop.permute.xlu0 %829
        %831 = vrot.lane.b32.xlu0 %v800, 16
        %v832 = vpop.permute.xlu0 %831
        %v833 = vrot.slane %v511, 1
        %v834 = vsel %vm687, %v719, %v833
        %v835 = vrot.slane %v520, 1
        %v836 = vsel %vm687, %v833, %v835
        %837 = vrot.lane.b32.xlu0 %v694, 20
        %v838 = vpop.permute.xlu0 %837
        %839 = vrot.lane.b32.xlu0 %v696, 20
        %v840 = vpop.permute.xlu0 %839
        %841 = vrot.lane.b32.xlu0 %v698, 20
        %v842 = vpop.permute.xlu0 %841
        %843 = vrot.lane.b32.xlu0 %v700, 20
        %v844 = vpop.permute.xlu0 %843
        %845 = vrot.lane.b32.xlu0 %v702, 20
        %v846 = vpop.permute.xlu0 %845
        %847 = vrot.lane.b32.xlu0 %v704, 20
        %v848 = vpop.permute.xlu0 %847
        %849 = vrot.lane.b32.xlu0 %v706, 20
        %v850 = vpop.permute.xlu0 %849
        %851 = vrot.lane.b32.xlu0 %v708, 20
        %v852 = vpop.permute.xlu0 %851
        %853 = vrot.lane.b32.xlu0 %v710, 20
        %v854 = vpop.permute.xlu0 %853
        %855 = vrot.lane.b32.xlu0 %v712, 20
        %v856 = vpop.permute.xlu0 %855
        %857 = vrot.lane.b32.xlu0 %v714, 20
        %v858 = vpop.permute.xlu0 %857
        %859 = vrot.lane.b32.xlu0 %v716, 20
        %v860 = vpop.permute.xlu0 %859
        %861 = vrot.lane.b32.xlu0 %v718, 20
        %v862 = vpop.permute.xlu0 %861
        %863 = vrot.lane.b32.xlu0 %v720, 20
        %v864 = vpop.permute.xlu0 %863
        %865 = vrot.lane.b32.xlu0 %v834, 20
        %v866 = vpop.permute.xlu0 %865
        %867 = vrot.lane.b32.xlu0 %v836, 20
        %v868 = vpop.permute.xlu0 %867
        %869 = vrot.lane.b32.xlu0 %v490, 24
        %v870 = vpop.permute.xlu0 %869
        %871 = vrot.lane.b32.xlu0 %v491, 24
        %v872 = vpop.permute.xlu0 %871
        %873 = vrot.lane.b32.xlu0 %v492, 24
        %v874 = vpop.permute.xlu0 %873
        %875 = vrot.lane.b32.xlu0 %v493, 24
        %v876 = vpop.permute.xlu0 %875
        %877 = vrot.lane.b32.xlu0 %v494, 24
        %v878 = vpop.permute.xlu0 %877
        %879 = vrot.lane.b32.xlu0 %v495, 24
        %v880 = vpop.permute.xlu0 %879
        %881 = vrot.lane.b32.xlu0 %v496, 24
        %v882 = vpop.permute.xlu0 %881
        %883 = vrot.lane.b32.xlu0 %v497, 24
        %v884 = vpop.permute.xlu0 %883
        %885 = vrot.lane.b32.xlu0 %v498, 24
        %v886 = vpop.permute.xlu0 %885
        %887 = vrot.lane.b32.xlu0 %v499, 24
        %v888 = vpop.permute.xlu0 %887
        %889 = vrot.lane.b32.xlu0 %v500, 24
        %v890 = vpop.permute.xlu0 %889
        %891 = vrot.lane.b32.xlu0 %v501, 24
        %v892 = vpop.permute.xlu0 %891
        %893 = vrot.lane.b32.xlu0 %v510, 24
        %v894 = vpop.permute.xlu0 %893
        %895 = vrot.lane.b32.xlu0 %v511, 24
        %v896 = vpop.permute.xlu0 %895
        %897 = vrot.lane.b32.xlu0 %v520, 24
        %v898 = vpop.permute.xlu0 %897
        %899 = vrot.lane.b32.xlu0 %v521, 24
        %v900 = vpop.permute.xlu0 %899
        %v901 = vshrl.u32 %v520, 16
        %v903 = vor.u32 %v901, %v799
        %v905 = vshll.u32 %v521, 16
        %v907 = vrot.slane %v905, 1
        %v908 = vsel %vm522, %v903, %v907
        %v909 = vshrl.u32 %v521, 16
        %v911 = vor.u32 %v909, %v907
        %v913 = vshll.u32 0, 16
        %v915 = vrot.slane %v913, 1
        %v916 = vsel %vm522, %v911, %v915
        %917 = vrot.lane.b32.xlu0 %v566, 28
        %v918 = vpop.permute.xlu0 %917
        %919 = vrot.lane.b32.xlu0 %v574, 28
        %v920 = vpop.permute.xlu0 %919
        %921 = vrot.lane.b32.xlu0 %v582, 28
        %v922 = vpop.permute.xlu0 %921
        %923 = vrot.lane.b32.xlu0 %v590, 28
        %v924 = vpop.permute.xlu0 %923
        %925 = vrot.lane.b32.xlu0 %v598, 28
        %v926 = vpop.permute.xlu0 %925
        %927 = vrot.lane.b32.xlu0 %v606, 28
        %v928 = vpop.permute.xlu0 %927
        %929 = vrot.lane.b32.xlu0 %v614, 28
        %v930 = vpop.permute.xlu0 %929
        %931 = vrot.lane.b32.xlu0 %v622, 28
        %v932 = vpop.permute.xlu0 %931
        %933 = vrot.lane.b32.xlu0 %v630, 28
        %v934 = vpop.permute.xlu0 %933
        %935 = vrot.lane.b32.xlu0 %v638, 28
        %v936 = vpop.permute.xlu0 %935
        %937 = vrot.lane.b32.xlu0 %v646, 28
        %v938 = vpop.permute.xlu0 %937
        %939 = vrot.lane.b32.xlu0 %v654, 28
        %v940 = vpop.permute.xlu0 %939
        %941 = vrot.lane.b32.xlu0 %v792, 28
        %v942 = vpop.permute.xlu0 %941
        %943 = vrot.lane.b32.xlu0 %v800, 28
        %v944 = vpop.permute.xlu0 %943
        %945 = vrot.lane.b32.xlu0 %v908, 28
        %v946 = vpop.permute.xlu0 %945
        %947 = vrot.lane.b32.xlu0 %v916, 28
        %v948 = vpop.permute.xlu0 %947
        %v950 = vrot.slane %v521, 1
        %v951 = vsel %vm687, %v835, %v950
        %v952 = vrot.slane 0, 1
        %v953 = vsel %vm687, %v950, %v952
        %954 = vrot.lane.b32.xlu0 %v698, 32
        %v955 = vpop.permute.xlu0 %954
        %956 = vrot.lane.b32.xlu0 %v700, 32
        %v957 = vpop.permute.xlu0 %956
        %958 = vrot.lane.b32.xlu0 %v702, 32
        %v959 = vpop.permute.xlu0 %958
        %960 = vrot.lane.b32.xlu0 %v704, 32
        %v961 = vpop.permute.xlu0 %960
        %962 = vrot.lane.b32.xlu0 %v706, 32
        %v963 = vpop.permute.xlu0 %962
        %964 = vrot.lane.b32.xlu0 %v708, 32
        %v965 = vpop.permute.xlu0 %964
        %966 = vrot.lane.b32.xlu0 %v710, 32
        %v967 = vpop.permute.xlu0 %966
        %968 = vrot.lane.b32.xlu0 %v712, 32
        %v969 = vpop.permute.xlu0 %968
        %970 = vrot.lane.b32.xlu0 %v714, 32
        %v971 = vpop.permute.xlu0 %970
        %972 = vrot.lane.b32.xlu0 %v716, 32
        %v973 = vpop.permute.xlu0 %972
        %974 = vrot.lane.b32.xlu0 %v718, 32
        %v975 = vpop.permute.xlu0 %974
        %976 = vrot.lane.b32.xlu0 %v720, 32
        %v977 = vpop.permute.xlu0 %976
        %978 = vrot.lane.b32.xlu0 %v834, 32
        %v979 = vpop.permute.xlu0 %978
        %980 = vrot.lane.b32.xlu0 %v836, 32
        %v981 = vpop.permute.xlu0 %980
        %982 = vrot.lane.b32.xlu0 %v951, 32
        %v983 = vpop.permute.xlu0 %982
        %984 = vrot.lane.b32.xlu0 %v953, 32
        %v985 = vpop.permute.xlu0 %984
        %vm986 = vcmask 31744
        %v988 = vsel %vm986, %v486, %v656
        %v990 = vsel %vm986, %v487, %v658
        %v992 = vsel %vm986, %v488, %v660
        %v994 = vsel %vm986, %v489, %v662
        %v996 = vsel %vm986, %v490, %v664
        %v998 = vsel %vm986, %v491, %v666
        %v1000 = vsel %vm986, %v492, %v668
        %v1002 = vsel %vm986, %v493, %v670
        %v1004 = vsel %vm986, %v494, %v672
        %v1006 = vsel %vm986, %v495, %v674
        %v1008 = vsel %vm986, %v496, %v676
        %v1010 = vsel %vm986, %v497, %v678
        %v1012 = vsel %vm986, %v498, %v680
        %v1014 = vsel %vm986, %v499, %v682
        %v1016 = vsel %vm986, %v500, %v684
        %v1018 = vsel %vm986, %v501, %v686
        %vm1019 = vcmask 64512
        %v1021 = vsel %vm1019, %v988, %v722
        %v1023 = vsel %vm1019, %v990, %v724
        %v1025 = vsel %vm1019, %v992, %v726
        %v1027 = vsel %vm1019, %v994, %v728
        %v1029 = vsel %vm1019, %v996, %v730
        %v1031 = vsel %vm1019, %v998, %v732
        %v1033 = vsel %vm1019, %v1000, %v734
        %v1035 = vsel %vm1019, %v1002, %v736
        %v1037 = vsel %vm1019, %v1004, %v738
        %v1039 = vsel %vm1019, %v1006, %v740
        %v1041 = vsel %vm1019, %v1008, %v742
        %v1043 = vsel %vm1019, %v1010, %v744
        %v1045 = vsel %vm1019, %v1012, %v746
        %v1047 = vsel %vm1019, %v1014, %v748
        %v1049 = vsel %vm1019, %v1016, %v750
        %v1051 = vsel %vm1019, %v1018, %v752
        %vm1052 = vcmask 97280
        %v1054 = vsel %vm1052, %v1021, %v754
        %v1056 = vsel %vm1052, %v1023, %v756
        %v1058 = vsel %vm1052, %v1025, %v758
        %v1060 = vsel %vm1052, %v1027, %v760
        %v1062 = vsel %vm1052, %v1029, %v762
        %v1064 = vsel %vm1052, %v1031, %v764
        %v1066 = vsel %vm1052, %v1033, %v766
        %v1068 = vsel %vm1052, %v1035, %v768
        %v1070 = vsel %vm1052, %v1037, %v770
        %v1072 = vsel %vm1052, %v1039, %v772
        %v1074 = vsel %vm1052, %v1041, %v774
        %v1076 = vsel %vm1052, %v1043, %v776
        %v1078 = vsel %vm1052, %v1045, %v778
        %v1080 = vsel %vm1052, %v1047, %v780
        %v1082 = vsel %vm1052, %v1049, %v782
        %v1084 = vsel %vm1052, %v1051, %v784
        %vm1085 = vcmask 130048
        %v1087 = vsel %vm1085, %v1054, %v802
        %v1089 = vsel %vm1085, %v1056, %v804
        %v1091 = vsel %vm1085, %v1058, %v806
        %v1093 = vsel %vm1085, %v1060, %v808
        %v1095 = vsel %vm1085, %v1062, %v810
        %v1097 = vsel %vm1085, %v1064, %v812
        %v1099 = vsel %vm1085, %v1066, %v814
        %v1101 = vsel %vm1085, %v1068, %v816
        %v1103 = vsel %vm1085, %v1070, %v818
        %v1105 = vsel %vm1085, %v1072, %v820
        %v1107 = vsel %vm1085, %v1074, %v822
        %v1109 = vsel %vm1085, %v1076, %v824
        %v1111 = vsel %vm1085, %v1078, %v826
        %v1113 = vsel %vm1085, %v1080, %v828
        %v1115 = vsel %vm1085, %v1082, %v830
        %v1117 = vsel %vm1085, %v1084, %v832
        %vm1118 = vcmask 162816
        %v1120 = vsel %vm1118, %v1087, %v838
        %v1122 = vsel %vm1118, %v1089, %v840
        %v1124 = vsel %vm1118, %v1091, %v842
        %v1126 = vsel %vm1118, %v1093, %v844
        %v1128 = vsel %vm1118, %v1095, %v846
        %v1130 = vsel %vm1118, %v1097, %v848
        %v1132 = vsel %vm1118, %v1099, %v850
        %v1134 = vsel %vm1118, %v1101, %v852
        %v1136 = vsel %vm1118, %v1103, %v854
        %v1138 = vsel %vm1118, %v1105, %v856
        %v1140 = vsel %vm1118, %v1107, %v858
        %v1142 = vsel %vm1118, %v1109, %v860
        %v1144 = vsel %vm1118, %v1111, %v862
        %v1146 = vsel %vm1118, %v1113, %v864
        %v1148 = vsel %vm1118, %v1115, %v866
        %v1150 = vsel %vm1118, %v1117, %v868
        %vm1151 = vcmask 195584
        %v1153 = vsel %vm1151, %v1120, %v870
        %v1155 = vsel %vm1151, %v1122, %v872
        %v1157 = vsel %vm1151, %v1124, %v874
        %v1159 = vsel %vm1151, %v1126, %v876
        %v1161 = vsel %vm1151, %v1128, %v878
        %v1163 = vsel %vm1151, %v1130, %v880
        %v1165 = vsel %vm1151, %v1132, %v882
        %v1167 = vsel %vm1151, %v1134, %v884
        %v1169 = vsel %vm1151, %v1136, %v886
        %v1171 = vsel %vm1151, %v1138, %v888
        %v1173 = vsel %vm1151, %v1140, %v890
        %v1175 = vsel %vm1151, %v1142, %v892
        %v1177 = vsel %vm1151, %v1144, %v894
        %v1179 = vsel %vm1151, %v1146, %v896
        %v1181 = vsel %vm1151, %v1148, %v898
        %v1183 = vsel %vm1151, %v1150, %v900
        %vm1184 = vcmask 228352
        %v1186 = vsel %vm1184, %v1153, %v918
        %v1188 = vsel %vm1184, %v1155, %v920
        %v1190 = vsel %vm1184, %v1157, %v922
        %v1192 = vsel %vm1184, %v1159, %v924
        %v1194 = vsel %vm1184, %v1161, %v926
        %v1196 = vsel %vm1184, %v1163, %v928
        %v1198 = vsel %vm1184, %v1165, %v930
        %v1200 = vsel %vm1184, %v1167, %v932
        %v1202 = vsel %vm1184, %v1169, %v934
        %v1204 = vsel %vm1184, %v1171, %v936
        %v1206 = vsel %vm1184, %v1173, %v938
        %v1208 = vsel %vm1184, %v1175, %v940
        %v1210 = vsel %vm1184, %v1177, %v942
        %v1212 = vsel %vm1184, %v1179, %v944
        %v1214 = vsel %vm1184, %v1181, %v946
        %v1216 = vsel %vm1184, %v1183, %v948
        %vm1217 = vcmask 261120
        %v1219 = vsel %vm1217, %v1186, %v955
        %v1221 = vsel %vm1217, %v1188, %v957
        %v1223 = vsel %vm1217, %v1190, %v959
        %v1225 = vsel %vm1217, %v1192, %v961
        %v1227 = vsel %vm1217, %v1194, %v963
        %v1229 = vsel %vm1217, %v1196, %v965
        %v1231 = vsel %vm1217, %v1198, %v967
        %v1233 = vsel %vm1217, %v1200, %v969
        %v1235 = vsel %vm1217, %v1202, %v971
        %v1237 = vsel %vm1217, %v1204, %v973
        %v1239 = vsel %vm1217, %v1206, %v975
        %v1241 = vsel %vm1217, %v1208, %v977
        %v1243 = vsel %vm1217, %v1210, %v979
        %v1245 = vsel %vm1217, %v1212, %v981
        %v1247 = vsel %vm1217, %v1214, %v983
        %v1249 = vsel %vm1217, %v1216, %v985
        %v1250 = vld [vmem:[%s3] sm:$0xf]
        %v1251 = vld [vmem:[%s3 + $0x4] sm:$0xf]
        %v1252 = vld [vmem:[%s3 + $0x8] sm:$0xf]
        %v1253 = vld [vmem:[%s3 + $0xc] sm:$0xf]
        %v1254 = vld [vmem:[%s3 + $0x10] sm:$0x3]
        %v1255 = vld [vmem:[%s4] sm:$0x1]
        %v1257 = vlaneseq
        %v1258 = vshrl.u32 %v1257, 7
        %v1259 = vsub.s32 0, %v1258
        %v1260 = vrot.slane %v1255, %v1259
        %v1267 = vunpack.c.l.b16 %v1250
        %v1268 = vunpack.c.l.b16 %v1251
        %v1269 = vunpack.c.l.b16 %v1252
        %v1270 = vunpack.c.l.b16 %v1253
        %v1271 = vunpack.c.l.b16 %v1254
        %v1272 = vpack.c.b16 %v1268, %v1267
        %v1273 = vpack.c.b16 %v1270, %v1269
        %v1274 = vpack.c.b16 %v1271, %v1271
        %vm1277 = vcmask 293888
        %v1278 = vsel %vm1277, %v1219, 0
        %v1280 = vsel %vm1277, %v1221, 0
        %v1282 = vsel %vm1277, %v1223, 0
        %v1284 = vsel %vm1277, %v1225, 0
        %v1286 = vsel %vm1277, %v1227, 0
        %v1288 = vsel %vm1277, %v1229, 0
        %v1290 = vsel %vm1277, %v1231, 0
        %v1292 = vsel %vm1277, %v1233, 0
        %v1294 = vsel %vm1277, %v1235, 0
        %v1296 = vsel %vm1277, %v1237, 0
        %v1298 = vsel %vm1277, %v1239, 0
        %v1300 = vsel %vm1277, %v1241, 0
        %v1302 = vsel %vm1277, %v1243, 0
        %v1304 = vsel %vm1277, %v1245, 0
        %v1306 = vsel %vm1277, %v1247, 0
        %v1308 = vsel %vm1277, %v1249, 0
        %vm1310 = vcmask 1041408
        %v1312 = vsel %vm1310, %v1274, 0
        %1314 = vmatprep.subr.bf16.mxu0 0
        %1315 = vmatpush1.bf16.msra.mxu0 %v1272
        %1316 = vmatprep.subr.bf16.mxu0 0
        %1317 = vmatpush1.bf16.msra.mxu0 %v1273
        %1318 = vmatprep.subr.bf16.mxu0 0
        %1319 = vmatpush1.bf16.msra.mxu0 %v1312
        %1320 = vmatprep.subr.bf16.mxu0 0
        %1321 = vmatpush1.bf16.msra.mxu0 0
        %1322 = vmatprep.subr.bf16.mxu0 0
        %1323 = vmatpush1.bf16.msra.mxu0 0
        %1324 = vmatprep.subr.bf16.mxu0 0
        %1325 = vmatpush1.bf16.msra.mxu0 0
        %1326 = vmatprep.subr.bf16.mxu0 0
        %1327 = vmatpush1.bf16.msra.mxu0 0
        %1328 = vmatprep.subr.bf16.mxu0 0
        %1329 = vmatpush1.bf16.msra.mxu0 0
        %1330 = vmatprep.subr.bf16.mxu0 0
        %1331 = vmatpush1.bf16.msra.mxu0 0
        %1332 = vmatprep.subr.bf16.mxu0 0
        %1333 = vmatpush1.bf16.msra.mxu0 0
        %1334 = vmatprep.subr.bf16.mxu0 0
        %1335 = vmatpush1.bf16.msra.mxu0 0
        %1336 = vmatprep.subr.bf16.mxu0 0
        %1337 = vmatpush1.bf16.msra.mxu0 0
        %1338 = vmatprep.subr.bf16.mxu0 0
        %1339 = vmatpush1.bf16.msra.mxu0 0
        %1340 = vmatprep.subr.bf16.mxu0 0
        %1341 = vmatpush1.bf16.msra.mxu0 0
        %1342 = vmatprep.subr.bf16.mxu0 0
        %1343 = vmatpush1.bf16.msra.mxu0 0
        %1344 = vmatprep.subr.bf16.mxu0 0
        %1345 = vmatpush1.bf16.msra.mxu0 0
        %1346 = vmatprep.mubr.bf16.mxu0 0
        %1347 = vmatmul.mubr.bf16.gmra.mrb[0].mxu0 %v1278
        %v1348 = vpop.f32.mrb[0].mxu0
        %v1349 = vadd.f32 %v1260, %v1348
        %v1350 = vpop.f32.mrb[0].mxu0
        %v1351 = vpop.f32.mrb[0].mxu0
        %v1352 = vadd.f32 %v1260, %v1351
        %v1353 = vpop.f32.mrb[0].mxu0
        %1354 = vmatprep.mubr.bf16.mxu0 0
        %1355 = vmatmul.mubr.bf16.gmra.mrb[0].mxu0 %v1280
        %v1356 = vpop.f32.mrb[0].mxu0
        %v1357 = vadd.f32 %v1260, %v1356
        %v1358 = vpop.f32.mrb[0].mxu0
        %v1359 = vpop.f32.mrb[0].mxu0
        %v1360 = vadd.f32 %v1260, %v1359
        %v1361 = vpop.f32.mrb[0].mxu0
        %1362 = vmatprep.mubr.bf16.mxu0 0
        %1363 = vmatmul.mubr.bf16.gmra.mrb[0].mxu0 %v1282
        %v1364 = vpop.f32.mrb[0].mxu0
        %v1365 = vadd.f32 %v1260, %v1364
        %v1366 = vpop.f32.mrb[0].mxu0
        %v1367 = vpop.f32.mrb[0].mxu0
        %v1368 = vadd.f32 %v1260, %v1367
        %v1369 = vpop.f32.mrb[0].mxu0
        %1370 = vmatprep.mubr.bf16.mxu0 0
        %1371 = vmatmul.mubr.bf16.gmra.mrb[0].mxu0 %v1284
        %v1372 = vpop.f32.mrb[0].mxu0
        %v1373 = vadd.f32 %v1260, %v1372
        %v1374 = vpop.f32.mrb[0].mxu0
        %v1375 = vpop.f32.mrb[0].mxu0
        %v1376 = vadd.f32 %v1260, %v1375
        %v1377 = vpop.f32.mrb[0].mxu0
        %1378 = vmatprep.mubr.bf16.mxu0 0
        %1379 = vmatmul.mubr.bf16.gmra.mrb[0].mxu0 %v1286
        %v1380 = vpop.f32.mrb[0].mxu0
        %v1381 = vadd.f32 %v1260, %v1380
        %v1382 = vpop.f32.mrb[0].mxu0
        %v1383 = vpop.f32.mrb[0].mxu0
        %v1384 = vadd.f32 %v1260, %v1383
        %v1385 = vpop.f32.mrb[0].mxu0
        %1386 = vmatprep.mubr.bf16.mxu0 0
        %1387 = vmatmul.mubr.bf16.gmra.mrb[0].mxu0 %v1288
        %v1388 = vpop.f32.mrb[0].mxu0
        %v1389 = vadd.f32 %v1260, %v1388
        %v1390 = vpop.f32.mrb[0].mxu0
        %v1391 = vpop.f32.mrb[0].mxu0
        %v1392 = vadd.f32 %v1260, %v1391
        %v1393 = vpop.f32.mrb[0].mxu0
        %1394 = vmatprep.mubr.bf16.mxu0 0
        %1395 = vmatmul.mubr.bf16.gmra.mrb[0].mxu0 %v1290
        %v1396 = vpop.f32.mrb[0].mxu0
        %v1397 = vadd.f32 %v1260, %v1396
        %v1398 = vpop.f32.mrb[0].mxu0
        %v1399 = vpop.f32.mrb[0].mxu0
        %v1400 = vadd.f32 %v1260, %v1399
        %v1401 = vpop.f32.mrb[0].mxu0
        %1402 = vmatprep.mubr.bf16.mxu0 0
        %1403 = vmatmul.mubr.bf16.gmra.mrb[0].mxu0 %v1292
        %v1404 = vpop.f32.mrb[0].mxu0
        %v1405 = vadd.f32 %v1260, %v1404
        %v1406 = vpop.f32.mrb[0].mxu0
        %v1407 = vpop.f32.mrb[0].mxu0
        %v1408 = vadd.f32 %v1260, %v1407
        %v1409 = vpop.f32.mrb[0].mxu0
        %1410 = vmatprep.mubr.bf16.mxu0 0
        %1411 = vmatmul.mubr.bf16.gmra.mrb[0].mxu0 %v1294
        %v1412 = vpop.f32.mrb[0].mxu0
        %v1413 = vadd.f32 %v1260, %v1412
        %v1414 = vpop.f32.mrb[0].mxu0
        %v1415 = vpop.f32.mrb[0].mxu0
        %v1416 = vadd.f32 %v1260, %v1415
        %v1417 = vpop.f32.mrb[0].mxu0
        %1418 = vmatprep.mubr.bf16.mxu0 0
        %1419 = vmatmul.mubr.bf16.gmra.mrb[0].mxu0 %v1296
        %v1420 = vpop.f32.mrb[0].mxu0
        %v1421 = vadd.f32 %v1260, %v1420
        %v1422 = vpop.f32.mrb[0].mxu0
        %v1423 = vpop.f32.mrb[0].mxu0
        %v1424 = vadd.f32 %v1260, %v1423
        %v1425 = vpop.f32.mrb[0].mxu0
        %1426 = vmatprep.mubr.bf16.mxu0 0
        %1427 = vmatmul.mubr.bf16.gmra.mrb[0].mxu0 %v1298
        %v1428 = vpop.f32.mrb[0].mxu0
        %v1429 = vadd.f32 %v1260, %v1428
        %v1430 = vpop.f32.mrb[0].mxu0
        %v1431 = vpop.f32.mrb[0].mxu0
        %v1432 = vadd.f32 %v1260, %v1431
        %v1433 = vpop.f32.mrb[0].mxu0
        %1434 = vmatprep.mubr.bf16.mxu0 0
        %1435 = vmatmul.mubr.bf16.gmra.mrb[0].mxu0 %v1300
        %v1436 = vpop.f32.mrb[0].mxu0
        %v1437 = vadd.f32 %v1260, %v1436
        %v1438 = vpop.f32.mrb[0].mxu0
        %v1439 = vpop.f32.mrb[0].mxu0
        %v1440 = vadd.f32 %v1260, %v1439
        %v1441 = vpop.f32.mrb[0].mxu0
        %1442 = vmatprep.mubr.bf16.mxu0 0
        %1443 = vmatmul.mubr.bf16.gmra.mrb[0].mxu0 %v1302
        %v1444 = vpop.f32.mrb[0].mxu0
        %v1445 = vadd.f32 %v1260, %v1444
        %v1446 = vpop.f32.mrb[0].mxu0
        %v1447 = vpop.f32.mrb[0].mxu0
        %v1448 = vadd.f32 %v1260, %v1447
        %v1449 = vpop.f32.mrb[0].mxu0
        %1450 = vmatprep.mubr.bf16.mxu0 0
        %1451 = vmatmul.mubr.bf16.gmra.mrb[0].mxu0 %v1304
        %v1452 = vpop.f32.mrb[0].mxu0
        %v1453 = vadd.f32 %v1260, %v1452
        %v1454 = vpop.f32.mrb[0].mxu0
        %v1455 = vpop.f32.mrb[0].mxu0
        %v1456 = vadd.f32 %v1260, %v1455
        %v1457 = vpop.f32.mrb[0].mxu0
        %1458 = vmatprep.mubr.bf16.mxu0 0
        %1459 = vmatmul.mubr.bf16.gmra.mrb[0].mxu0 %v1306
        %v1460 = vpop.f32.mrb[0].mxu0
        %v1461 = vadd.f32 %v1260, %v1460
        %v1462 = vpop.f32.mrb[0].mxu0
        %v1463 = vpop.f32.mrb[0].mxu0
        %v1464 = vadd.f32 %v1260, %v1463
        %v1465 = vpop.f32.mrb[0].mxu0
        %1466 = vmatprep.mubr.bf16.mxu0 0
        %1467 = vmatmul.mubr.bf16.gmra.mrb[0].mxu0 %v1308
        %v1468 = vpop.f32.mrb[0].mxu0
        %v1469 = vadd.f32 %v1260, %v1468
        %v1470 = vpop.f32.mrb[0].mxu0
        %v1471 = vpop.f32.mrb[0].mxu0
        %v1472 = vadd.f32 %v1260, %v1471
        %v1473 = vpop.f32.mrb[0].mxu0
        %1474 = vdwg.mxu0
        %v1475 = vmax.f32 %v1349, 0.0
        %v1476 = vmax.f32 %v1352, 0.0
        %v1477 = vmax.f32 %v1357, 0.0
        %v1478 = vmax.f32 %v1360, 0.0
        %v1479 = vmax.f32 %v1365, 0.0
        %v1480 = vmax.f32 %v1368, 0.0
        %v1481 = vmax.f32 %v1373, 0.0
        %v1482 = vmax.f32 %v1376, 0.0
        %v1483 = vmax.f32 %v1381, 0.0
        %v1484 = vmax.f32 %v1384, 0.0
        %v1485 = vmax.f32 %v1389, 0.0
        %v1486 = vmax.f32 %v1392, 0.0
        %v1487 = vmax.f32 %v1397, 0.0
        %v1488 = vmax.f32 %v1400, 0.0
        %v1489 = vmax.f32 %v1405, 0.0
        %v1490 = vmax.f32 %v1408, 0.0
        %v1491 = vmax.f32 %v1413, 0.0
        %v1492 = vmax.f32 %v1416, 0.0
        %v1493 = vmax.f32 %v1421, 0.0
        %v1494 = vmax.f32 %v1424, 0.0
        %v1495 = vmax.f32 %v1429, 0.0
        %v1496 = vmax.f32 %v1432, 0.0
        %v1497 = vmax.f32 %v1437, 0.0
        %v1498 = vmax.f32 %v1440, 0.0
        %v1499 = vmax.f32 %v1445, 0.0
        %v1500 = vmax.f32 %v1448, 0.0
        %v1501 = vmax.f32 %v1453, 0.0
        %v1502 = vmax.f32 %v1456, 0.0
        %v1503 = vmax.f32 %v1461, 0.0
        %v1504 = vmax.f32 %v1464, 0.0
        %v1505 = vmax.f32 %v1469, 0.0
        %v1506 = vmax.f32 %v1472, 0.0
        %1507 = vst [vmem:[%s331] sm:$0xff] %v1475
        %1508 = vst [vmem:[%s331 + $0x8] sm:$0xff] %v1476
        %1509 = vst [vmem:[%s331 + $0x10] sm:$0xff] %v1477
        %1510 = vst [vmem:[%s331 + $0x18] sm:$0xff] %v1478
        %1511 = vst [vmem:[%s331 + $0x20] sm:$0xff] %v1479
        %1512 = vst [vmem:[%s331 + $0x28] sm:$0xff] %v1480
        %1513 = vst [vmem:[%s331 + $0x30] sm:$0xff] %v1481
        %1514 = vst [vmem:[%s331 + $0x38] sm:$0xff] %v1482
        %1515 = vst [vmem:[%s331 + $0x40] sm:$0xff] %v1483
        %1516 = vst [vmem:[%s331 + $0x48] sm:$0xff] %v1484
        %1517 = vst [vmem:[%s331 + $0x50] sm:$0xff] %v1485
        %1518 = vst [vmem:[%s331 + $0x58] sm:$0xff] %v1486
        %1519 = vst [vmem:[%s331 + $0x60] sm:$0xff] %v1487
        %1520 = vst [vmem:[%s331 + $0x68] sm:$0xff] %v1488
        %1521 = vst [vmem:[%s331 + $0x70] sm:$0xff] %v1489
        %1522 = vst [vmem:[%s331 + $0x78] sm:$0xff] %v1490
        %1523 = vst [vmem:[%s331 + $0x80] sm:$0xff] %v1491
        %1524 = vst [vmem:[%s331 + $0x88] sm:$0xff] %v1492
        %1525 = vst [vmem:[%s331 + $0x90] sm:$0xff] %v1493
        %1526 = vst [vmem:[%s331 + $0x98] sm:$0xff] %v1494
        %1527 = vst [vmem:[%s331 + $0xa0] sm:$0xff] %v1495
        %1528 = vst [vmem:[%s331 + $0xa8] sm:$0xff] %v1496
        %1529 = vst [vmem:[%s331 + $0xb0] sm:$0xff] %v1497
        %1530 = vst [vmem:[%s331 + $0xb8] sm:$0xff] %v1498
        %1531 = vst [vmem:[%s331 + $0xc0] sm:$0xff] %v1499
        %1532 = vst [vmem:[%s331 + $0xc8] sm:$0xff] %v1500
        %1533 = vst [vmem:[%s331 + $0xd0] sm:$0xff] %v1501
        %1534 = vst [vmem:[%s331 + $0xd8] sm:$0xff] %v1502
        %1535 = vst [vmem:[%s331 + $0xe0] sm:$0xff] %v1503
        %1536 = vst [vmem:[%s331 + $0xe8] sm:$0xff] %v1504
        %1537 = vst [vmem:[%s331 + $0xf0] sm:$0xff] %v1505
        %1538 = vst [vmem:[%s331 + $0xf8] sm:$0xff] %v1506
        %s1539 = sand.u32 %s177, 1
        %s1540 = scalar_lea.sflag [#allocation3], %s1539
        %s1541 = sand.u32 %s177, 1
        %s1542 = smul.addr %s1541, 256
        %s1543 = scalar_lea.vmem [#allocation2], %s1542
        // Predicated region
        $region41: #{tpu_custom_call.1} parent=39 // pred_check
          %p1544 = pneg %p187
        $region42: #{tpu_custom_call.1} parent=39 // pred_check_branch
          %1546 = sbr.rel (%p1544) target = $region44
        $region43: #{tpu_custom_call.1} parent=39 // pred_region
          %s1547 = smul.u32 32, %s24
          %s1549 = ssub.s32 4096, 4096
          %1550 = vsyncadd %s1540, %s1549
          %s1551 = smul.addr %s23, 64
          %s1552 = sadd.s32 %s1547, %s1551
          %s1553 = smul.addr %s1552, 128
          %s1554 = scalar_lea.hbm %s5, %s1553
          %s1555 = sshll.u32 %s1543, 4
          %s1556 = int_to_ptr.vmem [resolvable:$true] %s1555
          %1561 = dma.vmem_to_hbm [thread:$0]  %s1556, 4096, %s1554, %s1540, 128, 128, 8
        $region44: #{tpu_custom_call.1} parent=39 // pred_fallthru
          _
      $region40: #{tpu_custom_call.1} parent=5 // pred_fallthru
        _
      %p1562 = scmp.le.s32.totalorder 2, %s14
      // Predicated region
      $region45: #{tpu_custom_call.1} parent=5 // pred_check
        %p1563 = pneg %p1562
      $region46: #{tpu_custom_call.1} parent=5 // pred_check_branch
        %1565 = sbr.rel (%p1563) target = $region48
      $region47: #{tpu_custom_call.1} parent=5 // pred_region
        %s1566 = ssub.s32 %s14, 2
        // Predicated region
        $region49: #{tpu_custom_call.1} parent=47 // pred_check
          %p1567 = pneg %p193
        $region50: #{tpu_custom_call.1} parent=47 // pred_check_branch
          %1569 = sbr.rel (%p1567) target = $region52
        $region51: #{tpu_custom_call.1} parent=47 // pred_region
          %s1570 = sand.u32 %s178, 1
          %s1571 = scalar_lea.sflag [#allocation3], %s1570
          %s1572 = sand.u32 %s178, 1
          %s1573 = smul.addr %s1572, 256
          %s1574 = scalar_lea.vmem [#allocation2], %s1573
          %1575 = dma.done %s1571, 4096
        $region52: #{tpu_custom_call.1} parent=47 // pred_fallthru
          _
      $region48: #{tpu_custom_call.1} parent=5 // pred_fallthru
        _
    $region6: #{tpu_custom_call.1} parent=1 // loop_footer
      %s18 = sadd.s32 1, %s14
    $region7: #{tpu_custom_call.1} parent=1 // loop_footer_branch
      %13 = sbr.rel target = $region3
    $region8: #{tpu_custom_call.1} parent=1 // loop_exit
      _
    %1576 = vsyncpa [#allocation3], 1
    %s1577 = scalar_lea.sflag [#allocation3], 1
    %1578 = vsyncpa %s1577, 1

</llo_original>
